<compile_context>
chip_gen: v7x
topology: tpu7x:2x2x1
jax: 0.10.0
libtpu: 0.0.40
codegen_flags: <defaults>
</compile_context>

<pallas_src>
import math

import jax
import jax.numpy as jnp
from jax.experimental import pallas as pl
from jax.experimental.pallas import tpu as pltpu


# ---------------------------------------------------------------------------
# Pallas kernel: lane-dense elementwise multiply, map row broadcast over rows.
# ---------------------------------------------------------------------------
def _apply_map_kernel(x_ref, map_ref, o_ref):
    # x_ref: (TB, TF), map_ref: (1, TF) sublane-broadcast, o_ref: (TB, TF).
    o_ref[...] = x_ref[...] * map_ref[...]


def _choose_tiles(n_rows: int, n_lanes: int, itemsize: int,
                  target_block_bytes: int = 4 << 20):
    """Pick (TB, TF) ~= target_block_bytes, dtype-aware sublane alignment."""
    sub = 8 * max(1, 4 // itemsize)      # 8 (f32) / 16 (bf16) / 32 (int8,fp8)
    lane = 128
    # Prefer a full-F lane tile (contiguous HBM span per block, map DMA'd once).
    if n_lanes * itemsize * sub <= target_block_bytes:
        tf = n_lanes
    else:
        tf = max(lane,
                 min(n_lanes,
                     ((target_block_bytes // (itemsize * sub)) // lane) * lane))
    rows = max(sub, ((target_block_bytes // (tf * itemsize)) // sub) * sub)
    tb = n_rows if n_rows <= rows else rows
    return tb, tf


def apply_map(x: jax.Array, map2d: jax.Array) -> jax.Array:
    """x: (N, *feat) with prod(feat) == F; map2d: (1, F). Returns x * map."""
    N = x.shape[0]
    F = math.prod(x.shape[1:])
    assert map2d.shape == (1, F), (map2d.shape, F)

    # Dtype promotion like the PyTorch reference (torch.mul promotes).
    out_dtype = jnp.result_type(x.dtype, map2d.dtype)
    itemsize = jnp.dtype(out_dtype).itemsize

    x2 = x.reshape(N, F).astype(out_dtype)
    m2 = map2d.astype(out_dtype)

    # Lane-density guard: pad F to a multiple of 128 so output stores are
    # unmasked full-lane `vst` (masked vst.msk is the big streaming penalty).
    Fp = F if (F >= 128 and F % 128 == 0) else ((F + 127) // 128) * 128
    if Fp != F:
        x2 = jnp.pad(x2, ((0, 0), (0, Fp - F)))
        m2 = jnp.pad(m2, ((0, 0), (0, Fp - F)))

    TB, TF = _choose_tiles(N, Fp, itemsize)
    n_b = pl.cdiv(N, TB)
    n_f = pl.cdiv(Fp, TF)

    if n_f == 1:
        # Common case (C*H*W fits one tile): 1-D grid over batch.  Each x/out
        # block is one contiguous HBM region, map DMA'd once, leading
        # "parallel" axis has n_b blocks for v7x megacore sharding.
        grid = (n_b,)
        in_specs = [pl.BlockSpec((TB, TF), lambda i: (i, 0)),
                    pl.BlockSpec((1, TF), lambda i: (0, 0))]
        out_specs = pl.BlockSpec((TB, TF), lambda i: (i, 0))
        dims = ("parallel",)
    else:
        # Large-F fallback: feature tile outer, batch tile inner so the
        # (1, TF) map block is constant across the inner axis.
        grid = (n_f, n_b)
        in_specs = [pl.BlockSpec((TB, TF), lambda j, i: (i, j)),
                    pl.BlockSpec((1, TF), lambda j, i: (0, j))]
        out_specs = pl.BlockSpec((TB, TF), lambda j, i: (i, j))
        dims = ("parallel", "parallel")

    cp_kwargs = dict(dimension_semantics=dims)
    block_bytes = TB * TF * itemsize
    if block_bytes > (2 << 20):
        # Double-buffered x + out at ~4 MiB blocks (~16 MiB) overshoots v5e's
        # 16 MiB scoped-VMEM default; 28 MiB is safe on v5e/v6e (128 MiB
        # physical) and v7x (64 MiB physical).
        cp_kwargs["vmem_limit_bytes"] = 28 << 20

    out2 = pl.pallas_call(
        _apply_map_kernel,
        out_shape=jax.ShapeDtypeStruct((N, Fp), out_dtype),
        grid=grid,
        in_specs=in_specs,
        out_specs=out_specs,
        # Output aliases x: no separate output allocation; with caller-side
        # donation (jit donate_argnums) this also removes the defensive copy.
        input_output_aliases={0: 0},
        cost_estimate=pl.CostEstimate(
            flops=N * Fp,
            transcendentals=0,
            bytes_accessed=(2 * N * Fp + Fp) * itemsize),
        compiler_params=pltpu.CompilerParams(**cp_kwargs),
    )(x2, m2)

    if Fp != F:
        out2 = out2[:, :F]
    return out2.reshape((N,) + x.shape[1:])


# ---------------------------------------------------------------------------
# Deterministic parameter construction (mirrors NonLinWeight._create_map).
# Plain JAX; runs once at init time.
# ---------------------------------------------------------------------------
def create_map(key, function, shape: int, num_channels: int) -> jax.Array:
    size = shape
    linspace = jnp.linspace(-(size // 2) + 1, size // 2, num=size,
                            dtype=jnp.float32)
    base_map = jnp.outer(linspace, linspace)                            # (H, W)
    base_map = jnp.broadcast_to(base_map, (num_channels, size, size))   # (C,H,W)

    start_std, end_std = 0.5, 0.0
    step_std = -(start_std - end_std) / num_channels
    mean_step = 2.0 / num_channels
    # Integer-index construction avoids fp-accumulation off-by-one that
    # arange(float, float, float) can produce at the endpoint.
    idx = jnp.arange(num_channels, dtype=jnp.float32)
    means = -1.0 + mean_step * idx                                      # (C,)
    stds = start_std + step_std * idx                                   # (C,)

    k_norm, k_perm = jax.random.split(key)
    mult_vals = means + stds * jax.random.normal(k_norm, (num_channels,),
                                                 jnp.float32)
    perm = jax.random.permutation(k_perm, num_channels)
    mult_vals = mult_vals[perm]

    multed = jnp.einsum("cxy,c->cxy", base_map, mult_vals)
    return function(multed)                                             # (C,H,W)


class NonLinWeightPallas:
    def __init__(self, key, function, shape: int, num_channels: int,
                 batch_first: bool = True, negative: bool = False):
        self.batch_first = batch_first
        # `negative` branch is identical to the non-negative branch in the
        # reference module, so it does not change behavior.  The reference's
        # mul_shift_weight / add_shift_weight params never appear in
        # forward(), so they are omitted here.
        self.map_param = create_map(key, function, shape, num_channels)
        # Cached lane-dense flattened view of the map (avoids a per-call
        # reshape/cast launch).
        self._map2d = self.map_param.reshape(1, -1)

    def __call__(self, x: jax.Array) -> jax.Array:
        m_shape = self.map_param.shape
        if self.batch_first and x.ndim == len(m_shape) + 1 and x.shape[1:] == m_shape:
            return apply_map(x, self._map2d)                 # kernel path
        if not self.batch_first and x.shape == m_shape:
            return apply_map(x[None], self._map2d)[0]        # kernel path, N=1
        # TODO(synk): arbitrary broadcast layouts (other batch_first=False
        # shapes) fall back to plain XLA multiply; no dedicated Pallas path.
        return x * self.map_param


if __name__ == "__main__":
    key = jax.random.PRNGKey(0)
    k_param, k_input = jax.random.split(key)

    batch, channels, spatial = 2, 4, 16
    module = NonLinWeightPallas(k_param, jax.nn.sigmoid,
                                shape=spatial, num_channels=channels)

    x = jax.random.normal(k_input, (batch, channels, spatial, spatial),
                          jnp.float32)

    # Pure-JAX reference (computed before the kernel call).
    ref = x * module.map_param[None, :, :, :]

    out = module(x)
    out = jax.block_until_ready(out)

    assert out.shape == (batch, channels, spatial, spatial)
    assert out.dtype == ref.dtype
    assert jnp.allclose(out, ref, atol=1e-6, rtol=1e-6)

    print("KERNEL_OK")
</pallas_src>

<mosaic_0001>
module attributes {stable_mosaic.version = 11 : i64} {
  func.func @_apply_map_kernel(%arg0: i32, %arg1: memref<2x1024xf32, #tpu.memory_space<vmem>>, %arg2: memref<1x1024xf32, #tpu.memory_space<vmem>>, %arg3: memref<2x1024xf32, #tpu.memory_space<vmem>>) attributes {dimension_semantics = [#tpu.dimension_semantics<parallel>], iteration_bounds = array<i64: 1>, scalar_prefetch = 0 : i64, scratch_operands = 0 : i64, tpu.core_type = #tpu.core_type<tc>, window_params = [{transform_indices = @transform_0, window_bounds = array<i64: 2, 1024>}, {pipeline_mode = #tpu.pipeline_mode<synchronous>, transform_indices = @transform_1, window_bounds = array<i64: 1, 1024>}, {transform_indices = @transform_2, window_bounds = array<i64: 2, 1024>}]} {
    %c0 = arith.constant 0 : index
    %c0_0 = arith.constant 0 : index
    %0 = vector.load %arg1[%c0, %c0_0] : memref<2x1024xf32, #tpu.memory_space<vmem>>, vector<2x1024xf32>
    %c0_1 = arith.constant 0 : index
    %c0_2 = arith.constant 0 : index
    %1 = vector.load %arg2[%c0_1, %c0_2] : memref<1x1024xf32, #tpu.memory_space<vmem>>, vector<1x1024xf32>
    %2 = vector.broadcast %1 : vector<1x1024xf32> to vector<2x1024xf32>
    %3 = arith.mulf %0, %2 : vector<2x1024xf32>
    %c0_3 = arith.constant 0 : index
    %c0_4 = arith.constant 0 : index
    %4 = vector.load %arg3[%c0_3, %c0_4] : memref<2x1024xf32, #tpu.memory_space<vmem>>, vector<2x1024xf32>
    tpu.vector_store %arg3[%c0_3, %c0_4], %3 {strides = array<i32>} : memref<2x1024xf32, #tpu.memory_space<vmem>>, vector<2x1024xf32>,
    return
  }
  func.func @transform_0(%arg0: i32) -> (i32, i32) {
    %c0_i32 = arith.constant 0 : i32
    %c0_i32_0 = arith.constant 0 : i32
    return %arg0, %c0_i32 : i32, i32
  }
  func.func @transform_1(%arg0: i32) -> (i32, i32) {
    %c0_i32 = arith.constant 0 : i32
    %c0_i32_0 = arith.constant 0 : i32
    %c0_i32_1 = arith.constant 0 : i32
    return %c0_i32, %c0_i32_0 : i32, i32
  }
  func.func @transform_2(%arg0: i32) -> (i32, i32) {
    %c0_i32 = arith.constant 0 : i32
    %c0_i32_0 = arith.constant 0 : i32
    return %arg0, %c0_i32 : i32, i32
  }
}

</mosaic_0001>

<llo_original>
// kernel: tpu_custom_call.1
$region0: #{tpu_custom_call.1}
  #allocation0 [shape = 'u32[]', space=smem, size = 0x4, offset = 0x4, fixed_abs, tag = 'smem constant byte address 0x4 - core index']
  #allocation1 [shape = 'u32[144,128]{1,0:T(1,128)}', space=vmem, size = 0x12000, scoped, tag = 'internal scratch']
  %s0 = inlined_call_operand.hbm [shape: f32[2,1024], index: 0, kind: input, shape index: {}, may-alias: {0,2}]
  %s1 = inlined_call_operand.vmem [shape: f32[1,1024], index: 1, kind: input, shape index: {}]
  %s2 = inlined_call_operand.hbm [shape: f32[2,1024], index: 2, kind: output, shape index: {}, may-alias: {0,2}]
  %s3 = sld [smem:[#allocation0]]
  $region22: #{tpu_custom_call.1} parent=0
    _
  %s5 = ssub.s32 1, %s3
  %s6 = scalar_select 0, %s5, %s3
  $region1: #{tpu_custom_call.1} parent=0
    #allocation2 [shape = 'u8[8192]{0}', space=vmem, size = 0x2000, scoped, tag = 'input window, operand 0, single buffered']
    #allocation3 [shape = 's32[1]{0}', space=sflag, size = 0x4, scoped, tag = 'scoped memory for tpu_custom_call.1']
    #allocation4 [shape = 's32[1]{0}', space=sflag, size = 0x4, scoped, tag = 'scoped memory for tpu_custom_call.1']
    #allocation5 [shape = 'u8[8192]{0}', space=vmem, size = 0x2000, scoped, tag = 'output window, operand 0, single buffered']
    %7 = vsyncpa [#allocation3], 0
    %8 = vsyncpa [#allocation4], 0
    // Predicated region
    $region2: #{tpu_custom_call.1} parent=1 // pred_check
      _
    $region3: #{tpu_custom_call.1} parent=1 // pred_check_branch
      %10 = sbr.rel (0) target = $region5
    $region4: #{tpu_custom_call.1} parent=1 // pred_region
      %s12 = ssub.s32 256, 256
      %13 = vsyncadd [#allocation3], %s12
      %s15 = sshll.u32 [#allocation2], 4
      %s16 = int_to_ptr.vmem [resolvable:$true] %s15
      %18 = dma.hbm_to_vmem [thread:$0]  %s0, 256, %s16, [#allocation3]
    $region5: #{tpu_custom_call.1} parent=1 // pred_fallthru
      _
    // Predicated region
    $region6: #{tpu_custom_call.1} parent=1 // pred_check
      _
    $region7: #{tpu_custom_call.1} parent=1 // pred_check_branch
      %20 = sbr.rel (0) target = $region9
    $region8: #{tpu_custom_call.1} parent=1 // pred_region
      _
    $region9: #{tpu_custom_call.1} parent=1 // pred_fallthru
      _
    // Predicated region
    $region10: #{tpu_custom_call.1} parent=1 // pred_check
      _
    $region11: #{tpu_custom_call.1} parent=1 // pred_check_branch
      %22 = sbr.rel (0) target = $region13
    $region12: #{tpu_custom_call.1} parent=1 // pred_region
      %23 = dma.done [#allocation3], 256
    $region13: #{tpu_custom_call.1} parent=1 // pred_fallthru
      _
    %v24 = vld [vmem:[#allocation2] sm:$0xff]
    %v25 = vld [vmem:[#allocation2 + $0x8] sm:$0xff]
    %v26 = vld [vmem:[%s1] sm:$0xff]
    %v28 = vlaneseq
    %v29 = vshrl.u32 %v28, 7
    %v30 = vsub.s32 0, %v29
    %v31 = vrot.slane %v26, %v30
    %v32 = vlaneseq
    %v33 = vshrl.u32 %v32, 7
    %v34 = vsub.s32 1, %v33
    %v35 = vrot.slane %v26, %v34
    %v36 = vlaneseq
    %v37 = vshrl.u32 %v36, 7
    %v38 = vsub.s32 2, %v37
    %v39 = vrot.slane %v26, %v38
    %v40 = vlaneseq
    %v41 = vshrl.u32 %v40, 7
    %v42 = vsub.s32 3, %v41
    %v43 = vrot.slane %v26, %v42
    %v44 = vlaneseq
    %v45 = vshrl.u32 %v44, 7
    %v46 = vsub.s32 4, %v45
    %v47 = vrot.slane %v26, %v46
    %v48 = vlaneseq
    %v49 = vshrl.u32 %v48, 7
    %v50 = vsub.s32 5, %v49
    %v51 = vrot.slane %v26, %v50
    %v52 = vlaneseq
    %v53 = vshrl.u32 %v52, 7
    %v54 = vsub.s32 6, %v53
    %v55 = vrot.slane %v26, %v54
    %v56 = vlaneseq
    %v57 = vshrl.u32 %v56, 7
    %v58 = vsub.s32 7, %v57
    %v59 = vrot.slane %v26, %v58
    %v60 = vcombine.low %v31, %v35
    %v61 = vcombine.low %v39, %v43
    %v63 = vunpack.c.l.s4 1983009808
    %v64 = vunpack.c.0.s8 %v63
    %v65 = vlaneseq
    %v66 = vshrl.u32 %v65, 7
    %v67 = vsub.s32 %v64, %v66
    %v68 = vrot.slane %v60, %v67
    %v70 = vunpack.c.l.s4 1983009808
    %v71 = vunpack.c.0.s8 %v70
    %v72 = vlaneseq
    %v73 = vshrl.u32 %v72, 7
    %v74 = vsub.s32 %v71, %v73
    %v75 = vrot.slane %v61, %v74
    %v76 = vcombine.low %v68, %v75
    %v77 = vcombine.low %v47, %v51
    %v78 = vcombine.low %v55, %v59
    %v80 = vunpack.c.l.s4 1983009808
    %v81 = vunpack.c.0.s8 %v80
    %v82 = vlaneseq
    %v83 = vshrl.u32 %v82, 7
    %v84 = vsub.s32 %v81, %v83
    %v85 = vrot.slane %v77, %v84
    %v87 = vunpack.c.l.s4 1983009808
    %v88 = vunpack.c.0.s8 %v87
    %v89 = vlaneseq
    %v90 = vshrl.u32 %v89, 7
    %v91 = vsub.s32 %v88, %v90
    %v92 = vrot.slane %v78, %v91
    %v93 = vcombine.low %v85, %v92
    %v96 = vmul.f32 %v24, %v76
    %v97 = vmul.f32 %v25, %v93
    %98 = vst [vmem:[#allocation5] sm:$0xff] %v96
    %99 = vst [vmem:[#allocation5 + $0x8] sm:$0xff] %v97
    // Predicated region
    $region14: #{tpu_custom_call.1} parent=1 // pred_check
      _
    $region15: #{tpu_custom_call.1} parent=1 // pred_check_branch
      %101 = sbr.rel (0) target = $region17
    $region16: #{tpu_custom_call.1} parent=1 // pred_region
      %s103 = ssub.s32 256, 256
      %104 = vsyncadd [#allocation4], %s103
      %s106 = sshll.u32 [#allocation5], 4
      %s107 = int_to_ptr.vmem [resolvable:$true] %s106
      %109 = dma.vmem_to_hbm [thread:$0]  %s107, 256, %s2, [#allocation4]
    $region17: #{tpu_custom_call.1} parent=1 // pred_fallthru
      _
    // Predicated region
    $region18: #{tpu_custom_call.1} parent=1 // pred_check
      _
    $region19: #{tpu_custom_call.1} parent=1 // pred_check_branch
      %111 = sbr.rel (0) target = $region21
    $region20: #{tpu_custom_call.1} parent=1 // pred_region
      %112 = dma.done [#allocation4], 256
    $region21: #{tpu_custom_call.1} parent=1 // pred_fallthru
      _
    %113 = vsyncpa [#allocation3], 1
    %114 = vsyncpa [#allocation4], 1

</llo_original>
